<compile_context>
chip_gen: v7x
topology: tpu7x:2x2x1
jax: 0.10.0
libtpu: 0.0.40
codegen_flags: <defaults>
</compile_context>

<pallas_src>
import functools

import jax
import jax.numpy as jnp
from jax.experimental import pallas as pl
from jax.experimental.pallas import tpu as pltpu


def _round_up(v, m):
    return (v + m - 1) // m * m


def _vmem_budget_bytes():
    # ~80% of per-core VMEM so Mosaic keeps headroom for internal scratch.
    try:
        cap = int(pltpu.get_tpu_info().vmem_capacity_bytes)
    except Exception:
        cap = 64 * 1024 * 1024          # v7x-sized conservative fallback
    return int(cap * 0.8)


# ---------------------------------------------------------------------------
# Kernels
# ---------------------------------------------------------------------------
def _fused_kernel(x_ref, w1_ref, b1_ref, w2_ref, o_ref, *, compute_dtype):
    # x_ref : (tm, in_dim)   caller-dtype row tile (streamed once from HBM)
    # w1_ref: (in_dim, hid)  compute_dtype, fully resident
    # b1_ref: (1, hid)       f32
    # w2_ref: (1, hid)       f32 second-layer weight as a broadcast row
    # o_ref : (1, 1, tm)     f32, lane-dense logits for this row tile
    x = x_ref[...].astype(compute_dtype)
    h = jnp.dot(x, w1_ref[...], preferred_element_type=jnp.float32)
    h = jnp.maximum(h + b1_ref[...], 0.0)              # bias + ReLU (VPU)
    # Dropout(p=0.1): identity in eval mode.
    y = jnp.sum(h * w2_ref[...], axis=-1)              # (tm,)  VPU mul + XLU reduce
    o_ref[...] = y.reshape(o_ref.shape).astype(o_ref.dtype)


def _fused_kernel_ktiled(x_ref, w1_ref, b1_ref, w2_ref, o_ref, h_acc, *,
                         compute_dtype):
    # Grid: (row_tiles, k_tiles); in_dim is accumulated into h_acc (f32).
    k = pl.program_id(1)

    @pl.when(k == 0)
    def _():
        h_acc[...] = jnp.zeros_like(h_acc)

    x = x_ref[...].astype(compute_dtype)
    h_acc[...] += jnp.dot(x, w1_ref[...], preferred_element_type=jnp.float32)

    @pl.when(k == pl.num_programs(1) - 1)
    def _():
        h = jnp.maximum(h_acc[...] + b1_ref[...], 0.0)
        y = jnp.sum(h * w2_ref[...], axis=-1)
        o_ref[...] = y.reshape(o_ref.shape).astype(o_ref.dtype)


# ---------------------------------------------------------------------------
# Wrapper
# ---------------------------------------------------------------------------
@functools.partial(
    jax.jit,
    static_argnames=("tm", "compute_dtype", "k_tile", "single_buffer_weights"))
def _forward(x, w1, b1, w2, b2, *, tm, compute_dtype, k_tile,
             single_buffer_weights):
    lead_shape = x.shape[:-1]
    in_dim = x.shape[-1]
    hidden = w1.shape[1]

    x2d = x.reshape(-1, in_dim)                 # metadata reshape, no HBM copy
    m = x2d.shape[0]

    w1_c = w1.astype(compute_dtype)             # tiny one-time weight convert
    b1_r = b1.reshape(1, hidden).astype(jnp.float32)
    w2_r = w2.reshape(1, hidden).astype(jnp.float32)

    x_item = x.dtype.itemsize
    cd_item = jnp.dtype(compute_dtype).itemsize
    budget = _vmem_budget_bytes()
    wbuf = 1 if single_buffer_weights else 2

    # ---- K (in_dim) tiling: only when w1 cannot comfortably stay resident.
    if k_tile is None:
        k_tile = 0
        if wbuf * in_dim * hidden * cd_item > budget // 2:
            for cand in (512, 256, 128):
                if in_dim % cand == 0:
                    k_tile = cand
                    break
    tk = int(k_tile)
    k_tiled = tk > 0
    if k_tiled and (tk % 128 != 0 or in_dim % tk != 0):
        raise ValueError(
            f"k_tile={tk} must be a multiple of 128 that divides in_dim={in_dim}")

    # ---- Row tile: big enough to amortize the ~0.35us per-grid-step cost,
    #      small enough to fit the VMEM budget.  m <= tm -> one exact block.
    tm_req = tm
    if tm_req is None:
        tm_req = 2048 if in_dim <= 512 else (1024 if in_dim <= 2048 else 512)
    tm_req = int(tm_req)
    tm_eff = m if m <= tm_req else max(8, _round_up(tm_req, 8))

    def footprint(t):
        w1_bytes = (2 * tk * hidden if k_tiled else wbuf * in_dim * hidden) * cd_item
        return (2 * t * in_dim * x_item            # x double buffer (caller dtype)
                + w1_bytes                         # w1 (resident or K blocks)
                + wbuf * 2 * hidden * 4            # b1 + w2 rows
                + t * hidden * 4                   # h / f32 accumulator
                + 2 * t * 4)                       # lane-dense out buffers

    while tm_eff > 64 and footprint(tm_eff) > budget:
        tm_eff = max(64, _round_up(tm_eff // 2, 8))

    num_row_tiles = int(pl.cdiv(m, tm_eff))
    vmem_limit = int(min(max(2 * footprint(tm_eff), 32 * 1024 * 1024), budget))

    # Grid-invariant operands: request single buffering (saves VMEM, esp. v7x).
    wkw = {"pipeline_mode": pl.Buffered(1)} if single_buffer_weights else {}

    out_shape = jax.ShapeDtypeStruct((num_row_tiles, 1, tm_eff), jnp.float32)

    if not k_tiled:
        kernel = functools.partial(_fused_kernel, compute_dtype=compute_dtype)
        grid = (num_row_tiles,)
        in_specs = [
            pl.BlockSpec((tm_eff, in_dim), lambda i: (i, 0)),
            pl.BlockSpec((in_dim, hidden), lambda i: (0, 0), **wkw),
            pl.BlockSpec((1, hidden), lambda i: (0, 0), **wkw),
            pl.BlockSpec((1, hidden), lambda i: (0, 0), **wkw),
        ]
        out_spec = pl.BlockSpec((1, 1, tm_eff), lambda i: (i, 0, 0))
        scratch_shapes = ()
        dim_sem = ("parallel",)
    else:
        kernel = functools.partial(_fused_kernel_ktiled, compute_dtype=compute_dtype)
        grid = (num_row_tiles, in_dim // tk)
        in_specs = [
            pl.BlockSpec((tm_eff, tk), lambda i, k: (i, k)),
            pl.BlockSpec((tk, hidden), lambda i, k: (k, 0)),
            pl.BlockSpec((1, hidden), lambda i, k: (0, 0), **wkw),
            pl.BlockSpec((1, hidden), lambda i, k: (0, 0), **wkw),
        ]
        out_spec = pl.BlockSpec((1, 1, tm_eff), lambda i, k: (i, 0, 0))
        scratch_shapes = (pltpu.VMEM((tm_eff, hidden), jnp.float32),)
        dim_sem = ("parallel", "arbitrary")

    out = pl.pallas_call(
        kernel,
        out_shape=out_shape,
        grid_spec=pltpu.PrefetchScalarGridSpec(
            num_scalar_prefetch=0,
            grid=grid,
            in_specs=in_specs,
            out_specs=out_spec,
            scratch_shapes=scratch_shapes,
        ),
        compiler_params=pltpu.CompilerParams(
            dimension_semantics=dim_sem,
            vmem_limit_bytes=vmem_limit,
        ),
    )(x2d, w1_c, b1_r, w2_r)

    logits = out.reshape(num_row_tiles * tm_eff)[:m]
    logits = logits + b2.reshape(()).astype(jnp.float32)   # scalar 2nd-layer bias
    return logits.reshape(lead_shape)


_SINGLE_BUFFER_WEIGHTS_OK = None   # does this JAX accept pl.Buffered(1)? (cached)


def row_selector_head(x, w1, b1, w2, b2, *, tm=None,
                      compute_dtype=jnp.bfloat16, k_tile=None):
    """Fused RowSelectorHead forward: x (..., in_dim) -> logits (...)."""
    global _SINGLE_BUFFER_WEIGHTS_OK
    kwargs = dict(tm=tm, compute_dtype=compute_dtype, k_tile=k_tile)
    if _SINGLE_BUFFER_WEIGHTS_OK is None:
        try:
            out = _forward(x, w1, b1, w2, b2, single_buffer_weights=True, **kwargs)
            _SINGLE_BUFFER_WEIGHTS_OK = True
            return out
        except Exception:
            _SINGLE_BUFFER_WEIGHTS_OK = False
            return _forward(x, w1, b1, w2, b2, single_buffer_weights=False, **kwargs)
    return _forward(x, w1, b1, w2, b2,
                    single_buffer_weights=_SINGLE_BUFFER_WEIGHTS_OK, **kwargs)


# ---------------------------------------------------------------------------
# Params / reference / tests
# ---------------------------------------------------------------------------
def init_params(key, in_dim, hidden_dim):
    """Deterministic PyTorch-Linear-style (uniform) init."""
    k1, k2, k3, k4 = jax.random.split(key, 4)
    bound1 = 1.0 / jnp.sqrt(in_dim)
    bound2 = 1.0 / jnp.sqrt(hidden_dim)
    w1 = jax.random.uniform(k1, (in_dim, hidden_dim), jnp.float32, -bound1, bound1)
    b1 = jax.random.uniform(k2, (1, hidden_dim), jnp.float32, -bound1, bound1)
    w2 = jax.random.uniform(k3, (hidden_dim, 1), jnp.float32, -bound2, bound2)
    b2 = jax.random.uniform(k4, (1, 1), jnp.float32, -bound2, bound2)
    return w1, b1, w2, b2


def _reference(x, w1, b1, w2, b2):
    x2d = x.reshape(-1, x.shape[-1]).astype(jnp.float32)
    h = jnp.maximum(
        jnp.dot(x2d, w1, precision=jax.lax.Precision.HIGHEST) + b1.reshape(1, -1),
        0.0)
    y = jnp.dot(h, w2.reshape(-1, 1), precision=jax.lax.Precision.HIGHEST)
    y = y + b2.reshape(1, 1)
    return y[:, 0].reshape(x.shape[:-1])


if __name__ == "__main__":
    # --- small config consistent with the module (batch=2, seq=8, hidden=32) ---
    batch, seq, in_dim, hidden_dim = 2, 8, 32, 32
    key = jax.random.PRNGKey(0)
    kx, kp = jax.random.split(key)
    x = jax.random.normal(kx, (batch, seq, in_dim), jnp.float32)
    w1, b1, w2, b2 = init_params(kp, in_dim, hidden_dim)
    ref = _reference(x, w1, b1, w2, b2)

    # f32 compute path (tight numerical check).
    out_f32 = jax.block_until_ready(
        row_selector_head(x, w1, b1, w2, b2, compute_dtype=jnp.float32))
    assert out_f32.shape == (batch, seq), out_f32.shape
    assert jnp.allclose(out_f32, ref, atol=2e-3, rtol=2e-3)

    # Default bf16 streaming path (f32 accumulation) -> looser tolerance.
    out_bf16 = jax.block_until_ready(row_selector_head(x, w1, b1, w2, b2))
    assert out_bf16.shape == (batch, seq), out_bf16.shape
    assert jnp.allclose(out_bf16, ref, atol=5e-2, rtol=5e-2)

    # Ragged M with a multi-step row grid and a partial last tile (no padding).
    x2 = jax.random.normal(jax.random.PRNGKey(1), (5, 131, in_dim), jnp.float32)
    ref2 = _reference(x2, w1, b1, w2, b2)
    out2 = jax.block_until_ready(
        row_selector_head(x2, w1, b1, w2, b2, tm=256, compute_dtype=jnp.float32))
    assert out2.shape == (5, 131), out2.shape
    assert jnp.allclose(out2, ref2, atol=2e-3, rtol=2e-3)

    # K-tiled (in_dim split) path, as used for large w1 on v7x's 64 MiB VMEM.
    in_dim3, hidden3 = 256, 64
    w1b, b1b, w2b, b2b = init_params(jax.random.PRNGKey(2), in_dim3, hidden3)
    x3 = jax.random.normal(jax.random.PRNGKey(3), (4, 97, in_dim3), jnp.float32)
    ref3 = _reference(x3, w1b, b1b, w2b, b2b)
    out3 = jax.block_until_ready(
        row_selector_head(x3, w1b, b1b, w2b, b2b, tm=128, k_tile=128,
                          compute_dtype=jnp.float32))
    assert out3.shape == (4, 97), out3.shape
    assert jnp.allclose(out3, ref3, atol=1e-2, rtol=1e-2)

    print("KERNEL_OK")
</pallas_src>

<mosaic_0001>
module attributes {stable_mosaic.version = 11 : i64} {
  func.func @_fused_kernel(%arg0: i32, %arg1: memref<16x32xf32, #tpu.memory_space<vmem>>, %arg2: memref<32x32xf32, #tpu.memory_space<vmem>>, %arg3: memref<1x32xf32, #tpu.memory_space<vmem>>, %arg4: memref<1x32xf32, #tpu.memory_space<vmem>>, %arg5: memref<1x1x16xf32, #tpu.memory_space<vmem>>) attributes {dimension_semantics = [#tpu.dimension_semantics<parallel>], iteration_bounds = array<i64: 1>, scalar_prefetch = 0 : i64, scratch_operands = 0 : i64, tpu.core_type = #tpu.core_type<tc>, window_params = [{transform_indices = @transform_0, window_bounds = array<i64: 16, 32>}, {pipeline_mode = #tpu.pipeline_mode<synchronous>, transform_indices = @transform_1, window_bounds = array<i64: 32, 32>}, {pipeline_mode = #tpu.pipeline_mode<synchronous>, transform_indices = @transform_2, window_bounds = array<i64: 1, 32>}, {pipeline_mode = #tpu.pipeline_mode<synchronous>, transform_indices = @transform_3, window_bounds = array<i64: 1, 32>}, {transform_indices = @transform_4, window_bounds = array<i64: 1, 1, 16>}]} {
    %c0 = arith.constant 0 : index
    %c0_0 = arith.constant 0 : index
    %0 = vector.load %arg1[%c0, %c0_0] : memref<16x32xf32, #tpu.memory_space<vmem>>, vector<16x32xf32>
    %c0_1 = arith.constant 0 : index
    %c0_2 = arith.constant 0 : index
    %1 = vector.load %arg2[%c0_1, %c0_2] : memref<32x32xf32, #tpu.memory_space<vmem>>, vector<32x32xf32>
    %cst = arith.constant dense<0.000000e+00> : vector<16x32xf32>
    %2 = tpu.matmul %0, %1, %cst {dimension_numbers = #tpu.dot_dimension_numbers<[1], [0], [0], [1], [0, 0, 1, 1], [], []>} : vector<16x32xf32>, vector<32x32xf32>, vector<16x32xf32> -> vector<16x32xf32>
    %c0_3 = arith.constant 0 : index
    %c0_4 = arith.constant 0 : index
    %3 = vector.load %arg3[%c0_3, %c0_4] : memref<1x32xf32, #tpu.memory_space<vmem>>, vector<1x32xf32>
    %4 = vector.broadcast %3 : vector<1x32xf32> to vector<16x32xf32>
    %5 = arith.addf %2, %4 : vector<16x32xf32>
    %cst_5 = arith.constant 0.000000e+00 : f32
    %6 = vector.broadcast %cst_5 : f32 to vector<16x32xf32>
    %7 = arith.maximumf %5, %6 : vector<16x32xf32>
    %c0_6 = arith.constant 0 : index
    %c0_7 = arith.constant 0 : index
    %8 = vector.load %arg4[%c0_6, %c0_7] : memref<1x32xf32, #tpu.memory_space<vmem>>, vector<1x32xf32>
    %9 = vector.broadcast %8 : vector<1x32xf32> to vector<16x32xf32>
    %10 = arith.mulf %7, %9 : vector<16x32xf32>
    %cst_8 = arith.constant dense<0.000000e+00> : vector<16xf32>
    %11 = vector.multi_reduction <add>, %10, %cst_8 [1] : vector<16x32xf32> to vector<16xf32>
    %12 = vector.shape_cast %11 : vector<16xf32> to vector<1x1x16xf32>
    %c0_9 = arith.constant 0 : index
    %c0_10 = arith.constant 0 : index
    %c0_11 = arith.constant 0 : index
    %13 = vector.load %arg5[%c0_9, %c0_10, %c0_11] : memref<1x1x16xf32, #tpu.memory_space<vmem>>, vector<1x1x16xf32>
    tpu.vector_store %arg5[%c0_9, %c0_10, %c0_11], %12 {strides = array<i32>} : memref<1x1x16xf32, #tpu.memory_space<vmem>>, vector<1x1x16xf32>,
    return
  }
  func.func @transform_0(%arg0: i32) -> (i32, i32) {
    %c0_i32 = arith.constant 0 : i32
    %c0_i32_0 = arith.constant 0 : i32
    return %arg0, %c0_i32 : i32, i32
  }
  func.func @transform_1(%arg0: i32) -> (i32, i32) {
    %c0_i32 = arith.constant 0 : i32
    %c0_i32_0 = arith.constant 0 : i32
    %c0_i32_1 = arith.constant 0 : i32
    return %c0_i32, %c0_i32_0 : i32, i32
  }
  func.func @transform_2(%arg0: i32) -> (i32, i32) {
    %c0_i32 = arith.constant 0 : i32
    %c0_i32_0 = arith.constant 0 : i32
    %c0_i32_1 = arith.constant 0 : i32
    return %c0_i32, %c0_i32_0 : i32, i32
  }
  func.func @transform_3(%arg0: i32) -> (i32, i32) {
    %c0_i32 = arith.constant 0 : i32
    %c0_i32_0 = arith.constant 0 : i32
    %c0_i32_1 = arith.constant 0 : i32
    return %c0_i32, %c0_i32_0 : i32, i32
  }
  func.func @transform_4(%arg0: i32) -> (i32, i32, i32) {
    %c0_i32 = arith.constant 0 : i32
    %c0_i32_0 = arith.constant 0 : i32
    %c0_i32_1 = arith.constant 0 : i32
    return %arg0, %c0_i32, %c0_i32_0 : i32, i32, i32
  }
}

module attributes {stable_mosaic.version = 11 : i64} {
  func.func @_fused_kernel(%arg0: i32, %arg1: memref<16x32xf32, #tpu.memory_space<vmem>>, %arg2: memref<32x32xf32, #tpu.memory_space<vmem>>, %arg3: memref<1x32xf32, #tpu.memory_space<vmem>>, %arg4: memref<1x32xf32, #tpu.memory_space<vmem>>, %arg5: memref<1x1x16xf32, #tpu.memory_space<vmem>>) attributes {dimension_semantics = [#tpu.dimension_semantics<parallel>], iteration_bounds = array<i64: 1>, scalar_prefetch = 0 : i64, scratch_operands = 0 : i64, tpu.core_type = #tpu.core_type<tc>, window_params = [{transform_indices = @transform_0, window_bounds = array<i64: 16, 32>}, {pipeline_mode = #tpu.pipeline_mode<synchronous>, transform_indices = @transform_1, window_bounds = array<i64: 32, 32>}, {pipeline_mode = #tpu.pipeline_mode<synchronous>, transform_indices = @transform_2, window_bounds = array<i64: 1, 32>}, {pipeline_mode = #tpu.pipeline_mode<synchronous>, transform_indices = @transform_3, window_bounds = array<i64: 1, 32>}, {transform_indices = @transform_4, window_bounds = array<i64: 1, 1, 16>}]} {
    %c0 = arith.constant 0 : index
    %c0_0 = arith.constant 0 : index
    %0 = vector.load %arg1[%c0, %c0_0] : memref<16x32xf32, #tpu.memory_space<vmem>>, vector<16x32xf32>
    %c0_1 = arith.constant 0 : index
    %c0_2 = arith.constant 0 : index
    %1 = vector.load %arg2[%c0_1, %c0_2] : memref<32x32xf32, #tpu.memory_space<vmem>>, vector<32x32xf32>
    %cst = arith.constant dense<0.000000e+00> : vector<16x32xf32>
    %2 = tpu.matmul %0, %1, %cst {dimension_numbers = #tpu.dot_dimension_numbers<[1], [0], [0], [1], [0, 0, 1, 1], [], []>} : vector<16x32xf32>, vector<32x32xf32>, vector<16x32xf32> -> vector<16x32xf32>
    %c0_3 = arith.constant 0 : index
    %c0_4 = arith.constant 0 : index
    %3 = vector.load %arg3[%c0_3, %c0_4] : memref<1x32xf32, #tpu.memory_space<vmem>>, vector<1x32xf32>
    %4 = vector.broadcast %3 : vector<1x32xf32> to vector<16x32xf32>
    %5 = arith.addf %2, %4 : vector<16x32xf32>
    %cst_5 = arith.constant 0.000000e+00 : f32
    %6 = vector.broadcast %cst_5 : f32 to vector<16x32xf32>
    %7 = arith.maximumf %5, %6 : vector<16x32xf32>
    %c0_6 = arith.constant 0 : index
    %c0_7 = arith.constant 0 : index
    %8 = vector.load %arg4[%c0_6, %c0_7] : memref<1x32xf32, #tpu.memory_space<vmem>>, vector<1x32xf32>
    %9 = vector.broadcast %8 : vector<1x32xf32> to vector<16x32xf32>
    %10 = arith.mulf %7, %9 : vector<16x32xf32>
    %cst_8 = arith.constant dense<0.000000e+00> : vector<16xf32>
    %11 = vector.multi_reduction <add>, %10, %cst_8 [1] : vector<16x32xf32> to vector<16xf32>
    %12 = vector.shape_cast %11 : vector<16xf32> to vector<1x1x16xf32>
    %c0_9 = arith.constant 0 : index
    %c0_10 = arith.constant 0 : index
    %c0_11 = arith.constant 0 : index
    %13 = vector.load %arg5[%c0_9, %c0_10, %c0_11] : memref<1x1x16xf32, #tpu.memory_space<vmem>>, vector<1x1x16xf32>
    tpu.vector_store %arg5[%c0_9, %c0_10, %c0_11], %12 {strides = array<i32>} : memref<1x1x16xf32, #tpu.memory_space<vmem>>, vector<1x1x16xf32>,
    return
  }
  func.func @transform_0(%arg0: i32) -> (i32, i32) {
    %c0_i32 = arith.constant 0 : i32
    %c0_i32_0 = arith.constant 0 : i32
    return %arg0, %c0_i32 : i32, i32
  }
  func.func @transform_1(%arg0: i32) -> (i32, i32) {
    %c0_i32 = arith.constant 0 : i32
    %c0_i32_0 = arith.constant 0 : i32
    %c0_i32_1 = arith.constant 0 : i32
    return %c0_i32, %c0_i32_0 : i32, i32
  }
  func.func @transform_2(%arg0: i32) -> (i32, i32) {
    %c0_i32 = arith.constant 0 : i32
    %c0_i32_0 = arith.constant 0 : i32
    %c0_i32_1 = arith.constant 0 : i32
    return %c0_i32, %c0_i32_0 : i32, i32
  }
  func.func @transform_3(%arg0: i32) -> (i32, i32) {
    %c0_i32 = arith.constant 0 : i32
    %c0_i32_0 = arith.constant 0 : i32
    %c0_i32_1 = arith.constant 0 : i32
    return %c0_i32, %c0_i32_0 : i32, i32
  }
  func.func @transform_4(%arg0: i32) -> (i32, i32, i32) {
    %c0_i32 = arith.constant 0 : i32
    %c0_i32_0 = arith.constant 0 : i32
    %c0_i32_1 = arith.constant 0 : i32
    return %arg0, %c0_i32, %c0_i32_0 : i32, i32, i32
  }
}

</mosaic_0001>

<llo_original>
// kernel: _forward.1
$region0: #{_forward.1}
  #allocation0 [shape = 'u32[]', space=smem, size = 0x4, offset = 0x4, fixed_abs, tag = 'smem constant byte address 0x4 - core index']
  #allocation1 [shape = 'u32[144,128]{1,0:T(1,128)}', space=vmem, size = 0x12000, scoped, tag = 'internal scratch']
  %s0 = inlined_call_operand.hbm [shape: f32[16,32], index: 0, kind: input, shape index: {}]
  %s1 = inlined_call_operand.hbm [shape: f32[32,32], index: 1, kind: input, shape index: {}]
  %s2 = inlined_call_operand.vmem [shape: f32[1,32], index: 2, kind: input, shape index: {}]
  %s3 = inlined_call_operand.vmem [shape: f32[1,32], index: 3, kind: input, shape index: {}]
  %s4 = inlined_call_operand.vmem [shape: f32[1,1,16], index: 4, kind: output, shape index: {}]
  %s5 = sld [smem:[#allocation0]]
  $region34: #{_forward.1} parent=0
    _
  %s7 = ssub.s32 1, %s5
  %s8 = scalar_select 0, %s7, %s5
  $region1: #{_forward.1} parent=0
    #allocation2 [shape = 'u8[8192]{0}', space=vmem, size = 0x2000, scoped, tag = 'input window, operand 0, single buffered']
    #allocation3 [shape = 's32[1]{0}', space=sflag, size = 0x4, scoped, tag = 'scoped memory for _forward.1']
    #allocation4 [shape = 'u8[16384]{0}', space=vmem, size = 0x4000, scoped, tag = 'input window, operand 1, single buffered']
    #allocation5 [shape = 's32[1]{0}', space=sflag, size = 0x4, scoped, tag = 'scoped memory for _forward.1']
    %9 = vsyncpa [#allocation3], 0
    %10 = vsyncpa [#allocation5], 0
    // Predicated region
    $region2: #{_forward.1} parent=1 // pred_check
      _
    $region3: #{_forward.1} parent=1 // pred_check_branch
      %12 = sbr.rel (0) target = $region5
    $region4: #{_forward.1} parent=1 // pred_region
      %s14 = ssub.s32 256, 256
      %15 = vsyncadd [#allocation3], %s14
      %s16 = sshll.u32 [#allocation2], 4
      %s17 = int_to_ptr.vmem [resolvable:$true] %s16
      %22 = dma.hbm_to_vmem [thread:$0]  %s0, 256, %s17, [#allocation3], 128, 128, 8
    $region5: #{_forward.1} parent=1 // pred_fallthru
      _
    // Predicated region
    $region6: #{_forward.1} parent=1 // pred_check
      _
    $region7: #{_forward.1} parent=1 // pred_check_branch
      %24 = sbr.rel (0) target = $region9
    $region8: #{_forward.1} parent=1 // pred_region
      %s26 = ssub.s32 512, 512
      %27 = vsyncadd [#allocation5], %s26
      %s28 = sshll.u32 [#allocation4], 4
      %s29 = int_to_ptr.vmem [resolvable:$true] %s28
      %34 = dma.hbm_to_vmem [thread:$0]  %s1, 512, %s29, [#allocation5], 128, 128, 8
    $region9: #{_forward.1} parent=1 // pred_fallthru
      _
    // Predicated region
    $region10: #{_forward.1} parent=1 // pred_check
      _
    $region11: #{_forward.1} parent=1 // pred_check_branch
      %36 = sbr.rel (0) target = $region13
    $region12: #{_forward.1} parent=1 // pred_region
      _
    $region13: #{_forward.1} parent=1 // pred_fallthru
      _
    // Predicated region
    $region14: #{_forward.1} parent=1 // pred_check
      _
    $region15: #{_forward.1} parent=1 // pred_check_branch
      %38 = sbr.rel (0) target = $region17
    $region16: #{_forward.1} parent=1 // pred_region
      _
    $region17: #{_forward.1} parent=1 // pred_fallthru
      _
    // Predicated region
    $region18: #{_forward.1} parent=1 // pred_check
      _
    $region19: #{_forward.1} parent=1 // pred_check_branch
      %40 = sbr.rel (0) target = $region21
    $region20: #{_forward.1} parent=1 // pred_region
      %41 = dma.done [#allocation3], 256
    $region21: #{_forward.1} parent=1 // pred_fallthru
      _
    // Predicated region
    $region22: #{_forward.1} parent=1 // pred_check
      _
    $region23: #{_forward.1} parent=1 // pred_check_branch
      %43 = sbr.rel (0) target = $region25
    $region24: #{_forward.1} parent=1 // pred_region
      %44 = dma.done [#allocation5], 512
    $region25: #{_forward.1} parent=1 // pred_fallthru
      _
    %v45 = vld [vmem:[#allocation2] sm:$0xff]
    %v46 = vld [vmem:[#allocation2 + $0x8] sm:$0xff]
    %v47 = vld [vmem:[#allocation4] sm:$0xff]
    %v48 = vld [vmem:[#allocation4 + $0x8] sm:$0xff]
    %v49 = vld [vmem:[#allocation4 + $0x10] sm:$0xff]
    %v50 = vld [vmem:[#allocation4 + $0x18] sm:$0xff]
    %v51 = vld [vmem:[%s2] sm:$0x1]
    %v53 = vlaneseq
    %v54 = vshrl.u32 %v53, 7
    %v55 = vsub.s32 0, %v54
    %v56 = vrot.slane %v51, %v55
    %vm58 = vcmask 261120
    %v60 = vsel %vm58, %v45, 0
    %v63 = vsel %vm58, %v46, 0
    %65 = vmatprep.subr.mxu0 0.0
    %66 = vmatpush1.msra.mxu0 %v47
    %67 = vmatprep.subr.mxu0 0.0
    %68 = vmatpush1.msra.mxu0 %v48
    %69 = vmatprep.subr.mxu0 0.0
    %70 = vmatpush1.msra.mxu0 %v49
    %71 = vmatprep.subr.mxu0 0.0
    %72 = vmatpush1.msra.mxu0 %v50
    %73 = vmatprep.subr.mxu0 0.0
    %74 = vmatpush1.msra.mxu0 0.0
    %75 = vmatprep.subr.mxu0 0.0
    %76 = vmatpush1.msra.mxu0 0.0
    %77 = vmatprep.subr.mxu0 0.0
    %78 = vmatpush1.msra.mxu0 0.0
    %79 = vmatprep.subr.mxu0 0.0
    %80 = vmatpush1.msra.mxu0 0.0
    %81 = vmatprep.subr.mxu0 0.0
    %82 = vmatpush1.msra.mxu0 0.0
    %83 = vmatprep.subr.mxu0 0.0
    %84 = vmatpush1.msra.mxu0 0.0
    %85 = vmatprep.subr.mxu0 0.0
    %86 = vmatpush1.msra.mxu0 0.0
    %87 = vmatprep.subr.mxu0 0.0
    %88 = vmatpush1.msra.mxu0 0.0
    %89 = vmatprep.subr.mxu0 0.0
    %90 = vmatpush1.msra.mxu0 0.0
    %91 = vmatprep.subr.mxu0 0.0
    %92 = vmatpush1.msra.mxu0 0.0
    %93 = vmatprep.subr.mxu0 0.0
    %94 = vmatpush1.msra.mxu0 0.0
    %95 = vmatprep.subr.mxu0 0.0
    %96 = vmatpush1.msra.mxu0 0.0
    %97 = vmatprep.subr.mxu0 0.0
    %98 = vmatpush1.msra.mxu0 0.0
    %99 = vmatprep.subr.mxu0 0.0
    %100 = vmatpush1.msra.mxu0 0.0
    %101 = vmatprep.subr.mxu0 0.0
    %102 = vmatpush1.msra.mxu0 0.0
    %103 = vmatprep.subr.mxu0 0.0
    %104 = vmatpush1.msra.mxu0 0.0
    %105 = vmatprep.subr.mxu0 0.0
    %106 = vmatpush1.msra.mxu0 0.0
    %107 = vmatprep.subr.mxu0 0.0
    %108 = vmatpush1.msra.mxu0 0.0
    %109 = vmatprep.subr.mxu0 0.0
    %110 = vmatpush1.msra.mxu0 0.0
    %111 = vmatprep.subr.mxu0 0.0
    %112 = vmatpush1.msra.mxu0 0.0
    %113 = vmatprep.subr.mxu0 0.0
    %114 = vmatpush1.msra.mxu0 0.0
    %115 = vmatprep.subr.mxu0 0.0
    %116 = vmatpush1.msra.mxu0 0.0
    %117 = vmatprep.subr.mxu0 0.0
    %118 = vmatpush1.msra.mxu0 0.0
    %119 = vmatprep.subr.mxu0 0.0
    %120 = vmatpush1.msra.mxu0 0.0
    %121 = vmatprep.subr.mxu0 0.0
    %122 = vmatpush1.msra.mxu0 0.0
    %123 = vmatprep.subr.mxu0 0.0
    %124 = vmatpush1.msra.mxu0 0.0
    %125 = vmatprep.subr.mxu0 0.0
    %126 = vmatpush1.msra.mxu0 0.0
    %127 = vmatprep.subr.mxu0 0.0
    %128 = vmatpush1.msra.mxu0 0.0
    %129 = vmatprep.mubr.f32.mxu0 0.0
    %130 = vmatmul.mubr.f32.gmra.mrb[0].mxu0 %v60
    %v131 = vpop.f32.mrb[0].mxu0
    %v132 = vadd.f32 %v56, %v131
    %v133 = vpop.f32.mrb[0].mxu0
    %134 = vmatprep.mubr.f32.mxu0 0.0
    %135 = vmatmul.mubr.f32.gmra.mrb[0].mxu0 %v63
    %v136 = vpop.f32.mrb[0].mxu0
    %v137 = vadd.f32 %v56, %v136
    %v138 = vpop.f32.mrb[0].mxu0
    %139 = vdwg.mxu0
    %v140 = vmax.f32 %v132, 0.0
    %v141 = vmax.f32 %v137, 0.0
    %v142 = vld [vmem:[%s3] sm:$0x1]
    %v144 = vlaneseq
    %v145 = vshrl.u32 %v144, 7
    %v146 = vsub.s32 0, %v145
    %v147 = vrot.slane %v142, %v146
    %v149 = vmul.f32 %v140, %v147
    %v150 = vmul.f32 %v141, %v147
    %v151 = vsel %vm58, %v149, 0.0
    %152 = vadd.xlane.f32.xlu0 %v151
    %v153 = vpop.xlane.xlu0 %152
    %v154 = vsel %vm58, %v150, 0.0
    %155 = vadd.xlane.f32.xlu0 %v154
    %v156 = vpop.xlane.xlu0 %155
    %v159 = vlaneseq
    %v160 = vand.u32 %v159, 127
    %v161 = vlaneseq
    %v162 = vshrl.u32 %v161, 7
    %v163 = vsub.s32 %v160, %v162
    %v164 = vrot.slane %v153, %v163
    %v165 = vadd.s32 %v160, 4294967288
    %v166 = vlaneseq
    %v167 = vshrl.u32 %v166, 7
    %v168 = vsub.s32 %v165, %v167
    %v169 = vrot.slane %v156, %v168
    %vm170 = vcmask 130112
    %v171 = vsel %vm170, %v169, %v164
    %vm173 = vcmask 122880
    %174 = vst.msk [vmem:[%s4] sm:$0x1] %vm173, %v171
    // Predicated region
    $region26: #{_forward.1} parent=1 // pred_check
      _
    $region27: #{_forward.1} parent=1 // pred_check_branch
      %176 = sbr.rel (0) target = $region29
    $region28: #{_forward.1} parent=1 // pred_region
      _
    $region29: #{_forward.1} parent=1 // pred_fallthru
      _
    // Predicated region
    $region30: #{_forward.1} parent=1 // pred_check
      _
    $region31: #{_forward.1} parent=1 // pred_check_branch
      %178 = sbr.rel (0) target = $region33
    $region32: #{_forward.1} parent=1 // pred_region
      _
    $region33: #{_forward.1} parent=1 // pred_fallthru
      _
    %179 = vsyncpa [#allocation3], 1
    %180 = vsyncpa [#allocation5], 1

// kernel: _forward.1
$region0: #{_forward.1}
  #allocation0 [shape = 'u32[]', space=smem, size = 0x4, offset = 0x4, fixed_abs, tag = 'smem constant byte address 0x4 - core index']
  #allocation1 [shape = 'u32[144,128]{1,0:T(1,128)}', space=vmem, size = 0x12000, scoped, tag = 'internal scratch']
  %s0 = inlined_call_operand.hbm [shape: f32[16,32], index: 0, kind: input, shape index: {}]
  %s1 = inlined_call_operand.hbm [shape: f32[32,32], index: 1, kind: input, shape index: {}]
  %s2 = inlined_call_operand.vmem [shape: f32[1,32], index: 2, kind: input, shape index: {}]
  %s3 = inlined_call_operand.vmem [shape: f32[1,32], index: 3, kind: input, shape index: {}]
  %s4 = inlined_call_operand.vmem [shape: f32[1,1,16], index: 4, kind: output, shape index: {}]
  %s5 = sld [smem:[#allocation0]]
  $region34: #{_forward.1} parent=0
    _
  %s7 = ssub.s32 1, %s5
  %s8 = scalar_select 0, %s7, %s5
  $region1: #{_forward.1} parent=0
    #allocation2 [shape = 'u8[8192]{0}', space=vmem, size = 0x2000, scoped, tag = 'input window, operand 0, single buffered']
    #allocation3 [shape = 's32[1]{0}', space=sflag, size = 0x4, scoped, tag = 'scoped memory for _forward.1']
    #allocation4 [shape = 'u8[16384]{0}', space=vmem, size = 0x4000, scoped, tag = 'input window, operand 1, single buffered']
    #allocation5 [shape = 's32[1]{0}', space=sflag, size = 0x4, scoped, tag = 'scoped memory for _forward.1']
    %9 = vsyncpa [#allocation3], 0
    %10 = vsyncpa [#allocation5], 0
    // Predicated region
    $region2: #{_forward.1} parent=1 // pred_check
      _
    $region3: #{_forward.1} parent=1 // pred_check_branch
      %12 = sbr.rel (0) target = $region5
    $region4: #{_forward.1} parent=1 // pred_region
      %s14 = ssub.s32 256, 256
      %15 = vsyncadd [#allocation3], %s14
      %s16 = sshll.u32 [#allocation2], 4
      %s17 = int_to_ptr.vmem [resolvable:$true] %s16
      %22 = dma.hbm_to_vmem [thread:$0]  %s0, 256, %s17, [#allocation3], 128, 128, 8
    $region5: #{_forward.1} parent=1 // pred_fallthru
      _
    // Predicated region
    $region6: #{_forward.1} parent=1 // pred_check
      _
    $region7: #{_forward.1} parent=1 // pred_check_branch
      %24 = sbr.rel (0) target = $region9
    $region8: #{_forward.1} parent=1 // pred_region
      %s26 = ssub.s32 512, 512
      %27 = vsyncadd [#allocation5], %s26
      %s28 = sshll.u32 [#allocation4], 4
      %s29 = int_to_ptr.vmem [resolvable:$true] %s28
      %34 = dma.hbm_to_vmem [thread:$0]  %s1, 512, %s29, [#allocation5], 128, 128, 8
    $region9: #{_forward.1} parent=1 // pred_fallthru
      _
    // Predicated region
    $region10: #{_forward.1} parent=1 // pred_check
      _
    $region11: #{_forward.1} parent=1 // pred_check_branch
      %36 = sbr.rel (0) target = $region13
    $region12: #{_forward.1} parent=1 // pred_region
      _
    $region13: #{_forward.1} parent=1 // pred_fallthru
      _
    // Predicated region
    $region14: #{_forward.1} parent=1 // pred_check
      _
    $region15: #{_forward.1} parent=1 // pred_check_branch
      %38 = sbr.rel (0) target = $region17
    $region16: #{_forward.1} parent=1 // pred_region
      _
    $region17: #{_forward.1} parent=1 // pred_fallthru
      _
    // Predicated region
    $region18: #{_forward.1} parent=1 // pred_check
      _
    $region19: #{_forward.1} parent=1 // pred_check_branch
      %40 = sbr.rel (0) target = $region21
    $region20: #{_forward.1} parent=1 // pred_region
      %41 = dma.done [#allocation3], 256
    $region21: #{_forward.1} parent=1 // pred_fallthru
      _
    // Predicated region
    $region22: #{_forward.1} parent=1 // pred_check
      _
    $region23: #{_forward.1} parent=1 // pred_check_branch
      %43 = sbr.rel (0) target = $region25
    $region24: #{_forward.1} parent=1 // pred_region
      %44 = dma.done [#allocation5], 512
    $region25: #{_forward.1} parent=1 // pred_fallthru
      _
    %v45 = vld [vmem:[#allocation2] sm:$0xff]
    %v46 = vld [vmem:[#allocation2 + $0x8] sm:$0xff]
    %v47 = vld [vmem:[#allocation4] sm:$0xff]
    %v48 = vld [vmem:[#allocation4 + $0x8] sm:$0xff]
    %v49 = vld [vmem:[#allocation4 + $0x10] sm:$0xff]
    %v50 = vld [vmem:[#allocation4 + $0x18] sm:$0xff]
    %v51 = vld [vmem:[%s2] sm:$0x1]
    %v53 = vlaneseq
    %v54 = vshrl.u32 %v53, 7
    %v55 = vsub.s32 0, %v54
    %v56 = vrot.slane %v51, %v55
    %vm58 = vcmask 261120
    %v60 = vsel %vm58, %v45, 0
    %v63 = vsel %vm58, %v46, 0
    %65 = vmatprep.subr.mxu0 0.0
    %66 = vmatpush1.msra.mxu0 %v47
    %67 = vmatprep.subr.mxu0 0.0
    %68 = vmatpush1.msra.mxu0 %v48
    %69 = vmatprep.subr.mxu0 0.0
    %70 = vmatpush1.msra.mxu0 %v49
    %71 = vmatprep.subr.mxu0 0.0
    %72 = vmatpush1.msra.mxu0 %v50
    %73 = vmatprep.subr.mxu0 0.0
    %74 = vmatpush1.msra.mxu0 0.0
    %75 = vmatprep.subr.mxu0 0.0
    %76 = vmatpush1.msra.mxu0 0.0
    %77 = vmatprep.subr.mxu0 0.0
    %78 = vmatpush1.msra.mxu0 0.0
    %79 = vmatprep.subr.mxu0 0.0
    %80 = vmatpush1.msra.mxu0 0.0
    %81 = vmatprep.subr.mxu0 0.0
    %82 = vmatpush1.msra.mxu0 0.0
    %83 = vmatprep.subr.mxu0 0.0
    %84 = vmatpush1.msra.mxu0 0.0
    %85 = vmatprep.subr.mxu0 0.0
    %86 = vmatpush1.msra.mxu0 0.0
    %87 = vmatprep.subr.mxu0 0.0
    %88 = vmatpush1.msra.mxu0 0.0
    %89 = vmatprep.subr.mxu0 0.0
    %90 = vmatpush1.msra.mxu0 0.0
    %91 = vmatprep.subr.mxu0 0.0
    %92 = vmatpush1.msra.mxu0 0.0
    %93 = vmatprep.subr.mxu0 0.0
    %94 = vmatpush1.msra.mxu0 0.0
    %95 = vmatprep.subr.mxu0 0.0
    %96 = vmatpush1.msra.mxu0 0.0
    %97 = vmatprep.subr.mxu0 0.0
    %98 = vmatpush1.msra.mxu0 0.0
    %99 = vmatprep.subr.mxu0 0.0
    %100 = vmatpush1.msra.mxu0 0.0
    %101 = vmatprep.subr.mxu0 0.0
    %102 = vmatpush1.msra.mxu0 0.0
    %103 = vmatprep.subr.mxu0 0.0
    %104 = vmatpush1.msra.mxu0 0.0
    %105 = vmatprep.subr.mxu0 0.0
    %106 = vmatpush1.msra.mxu0 0.0
    %107 = vmatprep.subr.mxu0 0.0
    %108 = vmatpush1.msra.mxu0 0.0
    %109 = vmatprep.subr.mxu0 0.0
    %110 = vmatpush1.msra.mxu0 0.0
    %111 = vmatprep.subr.mxu0 0.0
    %112 = vmatpush1.msra.mxu0 0.0
    %113 = vmatprep.subr.mxu0 0.0
    %114 = vmatpush1.msra.mxu0 0.0
    %115 = vmatprep.subr.mxu0 0.0
    %116 = vmatpush1.msra.mxu0 0.0
    %117 = vmatprep.subr.mxu0 0.0
    %118 = vmatpush1.msra.mxu0 0.0
    %119 = vmatprep.subr.mxu0 0.0
    %120 = vmatpush1.msra.mxu0 0.0
    %121 = vmatprep.subr.mxu0 0.0
    %122 = vmatpush1.msra.mxu0 0.0
    %123 = vmatprep.subr.mxu0 0.0
    %124 = vmatpush1.msra.mxu0 0.0
    %125 = vmatprep.subr.mxu0 0.0
    %126 = vmatpush1.msra.mxu0 0.0
    %127 = vmatprep.subr.mxu0 0.0
    %128 = vmatpush1.msra.mxu0 0.0
    %129 = vmatprep.mubr.f32.mxu0 0.0
    %130 = vmatmul.mubr.f32.gmra.mrb[0].mxu0 %v60
    %v131 = vpop.f32.mrb[0].mxu0
    %v132 = vadd.f32 %v56, %v131
    %v133 = vpop.f32.mrb[0].mxu0
    %134 = vmatprep.mubr.f32.mxu0 0.0
    %135 = vmatmul.mubr.f32.gmra.mrb[0].mxu0 %v63
    %v136 = vpop.f32.mrb[0].mxu0
    %v137 = vadd.f32 %v56, %v136
    %v138 = vpop.f32.mrb[0].mxu0
    %139 = vdwg.mxu0
    %v140 = vmax.f32 %v132, 0.0
    %v141 = vmax.f32 %v137, 0.0
    %v142 = vld [vmem:[%s3] sm:$0x1]
    %v144 = vlaneseq
    %v145 = vshrl.u32 %v144, 7
    %v146 = vsub.s32 0, %v145
    %v147 = vrot.slane %v142, %v146
    %v149 = vmul.f32 %v140, %v147
    %v150 = vmul.f32 %v141, %v147
    %v151 = vsel %vm58, %v149, 0.0
    %152 = vadd.xlane.f32.xlu0 %v151
    %v153 = vpop.xlane.xlu0 %152
    %v154 = vsel %vm58, %v150, 0.0
    %155 = vadd.xlane.f32.xlu0 %v154
    %v156 = vpop.xlane.xlu0 %155
    %v159 = vlaneseq
    %v160 = vand.u32 %v159, 127
    %v161 = vlaneseq
    %v162 = vshrl.u32 %v161, 7
    %v163 = vsub.s32 %v160, %v162
    %v164 = vrot.slane %v153, %v163
    %v165 = vadd.s32 %v160, 4294967288
    %v166 = vlaneseq
    %v167 = vshrl.u32 %v166, 7
    %v168 = vsub.s32 %v165, %v167
    %v169 = vrot.slane %v156, %v168
    %vm170 = vcmask 130112
    %v171 = vsel %vm170, %v169, %v164
    %vm173 = vcmask 122880
    %174 = vst.msk [vmem:[%s4] sm:$0x1] %vm173, %v171
    // Predicated region
    $region26: #{_forward.1} parent=1 // pred_check
      _
    $region27: #{_forward.1} parent=1 // pred_check_branch
      %176 = sbr.rel (0) target = $region29
    $region28: #{_forward.1} parent=1 // pred_region
      _
    $region29: #{_forward.1} parent=1 // pred_fallthru
      _
    // Predicated region
    $region30: #{_forward.1} parent=1 // pred_check
      _
    $region31: #{_forward.1} parent=1 // pred_check_branch
      %178 = sbr.rel (0) target = $region33
    $region32: #{_forward.1} parent=1 // pred_region
      _
    $region33: #{_forward.1} parent=1 // pred_fallthru
      _
    %179 = vsyncpa [#allocation3], 1
    %180 = vsyncpa [#allocation5], 1

</llo_original>
